<compile_context>
chip_gen: v6e
topology: v6e:2x2x1
jax: 0.10.0
libtpu: 0.0.40
codegen_flags: <defaults>
</compile_context>

<pallas_src>
import functools

import jax
import jax.numpy as jnp
import numpy as np
from jax.experimental import pallas as pl
from jax.experimental.pallas import tpu as pltpu


def dilconv_kernel(x_ref, b_ref, gamma_ref, beta_ref, out_ref, *,
                   KH, stride, dilation, Ho, eps):
    """One grid step: NB samples, full spatial extent, lane-folded layout.

    x_ref:     (NB, Hp, Wp*Cin)      padded, lane-folded input (bf16 or f32)
    b_ref:     (KH, Wp*Cin, Wo*Cout) folded depthwise+pointwise weights
    gamma_ref: (1, Wo*Cout)          GroupNorm scale, tiled over Wo
    beta_ref:  (1, Wo*Cout)          GroupNorm shift, tiled over Wo
    out_ref:   (NB, Ho, Wo*Cout)
    """
    NB, _, WpC = x_ref.shape
    WoCout = out_ref.shape[-1]
    Hs = (Ho - 1) * stride + 1

    # ReLU (VPU). Padding is zero, so relu-then-pad == pad-then-relu.
    xr = jnp.maximum(x_ref[...], 0.0)

    # Depthwise dilated conv + 1x1 conv, fused into KH MXU matmuls.  The kw
    # taps and the Cin->Cout mixing live inside the precomputed B[kh]; only the
    # kh taps need (static) sublane shifts of the input slab.
    acc = jnp.zeros((NB * Ho, WoCout), jnp.float32)
    for kh in range(KH):
        h0 = kh * dilation
        slab = xr[:, h0:h0 + Hs:stride, :].reshape(NB * Ho, WpC)
        acc = acc + jnp.dot(slab, b_ref[kh],
                            preferred_element_type=jnp.float32)

    # GroupNorm(1, C_out): per-sample stats over (C, H, W), single pass.
    y = acc.reshape(NB, Ho, WoCout)
    cnt = jnp.float32(Ho * WoCout)
    s1 = jnp.sum(y, axis=(1, 2), keepdims=True)
    s2 = jnp.sum(y * y, axis=(1, 2), keepdims=True)
    mean = s1 / cnt
    var = s2 / cnt - mean * mean
    yn = (y - mean) * jax.lax.rsqrt(var + eps)
    out_ref[...] = (yn * gamma_ref[...] + beta_ref[...]).astype(out_ref.dtype)


def _fold_weights(w_dw, w_pw, gamma, beta, *, Wp, Wo, stride, dilation,
                  matmul_dtype):
    """Activation-independent weight prep (do once at init in a real model).

    B[kh, wi*Cin + c, w*Cout + co] =
        sum_kw [wi == w*stride + kw*dilation] * w_dw[c,0,kh,kw] * w_pw[co,c]
    """
    Cin, _, KH, KW = w_dw.shape
    Cout = w_pw.shape[0]
    dw = jnp.transpose(w_dw[:, 0, :, :], (1, 2, 0)).astype(jnp.float32)  # (KH,KW,Cin)
    pw = jnp.transpose(w_pw[:, :, 0, 0], (1, 0)).astype(jnp.float32)     # (Cin,Cout)

    wi = jnp.arange(Wp)
    wo = jnp.arange(Wo)
    kw = jnp.arange(KW)
    sel = (wi[None, :, None] ==
           (wo[None, None, :] * stride + kw[:, None, None] * dilation)
           ).astype(jnp.float32)                                         # (KW,Wp,Wo)
    B = jnp.einsum('kiw,hkc,co->hicwo', sel, dw, pw)                     # (KH,Wp,Cin,Wo,Cout)
    B = B.reshape(KH, Wp * Cin, Wo * Cout).astype(matmul_dtype)

    g = jnp.tile(gamma.reshape(1, Cout).astype(jnp.float32), (1, Wo))    # (1, Wo*Cout)
    b = jnp.tile(beta.reshape(1, Cout).astype(jnp.float32), (1, Wo))
    return B, g, b


def _samples_per_step(N):
    # Block samples per grid step, but keep >= 2 grid steps so the batch axis
    # can still be split across TensorCores (v7x megacore).
    if N < 4:
        return 1
    for nb in range(N // 2, 0, -1):
        if N % nb == 0:
            return nb
    return 1


@functools.partial(jax.jit,
                   static_argnames=("stride", "padding", "dilation", "eps",
                                    "matmul_dtype"))
def dil_conv_forward(x_nchw, w_dw, w_pw, gamma, beta, *, stride, padding,
                     dilation, eps=1e-5, matmul_dtype=jnp.bfloat16):
    """x_nchw: (N, Cin, H, W); w_dw: (Cin, 1, KH, KW); w_pw: (Cout, Cin, 1, 1)."""
    N, Cin, H, W = x_nchw.shape
    Cout = w_pw.shape[0]
    KH, KW = int(w_dw.shape[2]), int(w_dw.shape[3])
    Ho = (H + 2 * padding - dilation * (KH - 1) - 1) // stride + 1
    Wo = (W + 2 * padding - dilation * (KW - 1) - 1) // stride + 1
    Hp, Wp = H + 2 * padding, W + 2 * padding
    WpC, WoCout = Wp * Cin, Wo * Cout

    # NCHW -> padded, lane-folded (N, Hp, Wp*Cin).  These relayouts only exist
    # because the public API is NCHW; an NHWC-native model would skip them.
    x_nhwc = jnp.transpose(x_nchw, (0, 2, 3, 1))
    x_pad = jnp.pad(x_nhwc,
                    ((0, 0), (padding, padding), (padding, padding), (0, 0)))
    x_fold = x_pad.reshape(N, Hp, WpC).astype(matmul_dtype)

    B, g, b = _fold_weights(w_dw, w_pw, gamma, beta, Wp=Wp, Wo=Wo,
                            stride=stride, dilation=dilation,
                            matmul_dtype=matmul_dtype)

    NB = _samples_per_step(N)
    grid = (N // NB,)

    itemsize = np.dtype(matmul_dtype).itemsize
    vmem_limit = int(2 * (NB * Hp * WpC * itemsize          # x block (dbl buf)
                          + KH * WpC * WoCout * itemsize    # folded weights
                          + NB * Ho * WoCout * 4)           # out block
                     + (1 << 24))                           # headroom

    kernel = functools.partial(dilconv_kernel, KH=KH, stride=stride,
                               dilation=dilation, Ho=Ho, eps=eps)

    out_fold = pl.pallas_call(
        kernel,
        out_shape=jax.ShapeDtypeStruct((N, Ho, WoCout), x_nchw.dtype),
        grid_spec=pltpu.PrefetchScalarGridSpec(
            num_scalar_prefetch=0,
            grid=grid,
            in_specs=[
                pl.BlockSpec((NB, Hp, WpC), lambda n: (n, 0, 0)),
                pl.BlockSpec((KH, WpC, WoCout), lambda n: (0, 0, 0)),
                pl.BlockSpec((1, WoCout), lambda n: (0, 0)),
                pl.BlockSpec((1, WoCout), lambda n: (0, 0)),
            ],
            out_specs=pl.BlockSpec((NB, Ho, WoCout), lambda n: (n, 0, 0)),
        ),
        compiler_params=pltpu.CompilerParams(
            dimension_semantics=("parallel",),
            vmem_limit_bytes=vmem_limit),
    )(x_fold, B, g, b)

    # TODO(synk): for large H/W the folded weights grow O(W^2); tile the
    # spatial dims (grid over Ho rows with a dilation*(KH-1) halo) in that case.
    out_nhwc = out_fold.reshape(N, Ho, Wo, Cout)
    return jnp.transpose(out_nhwc, (0, 3, 1, 2))             # back to NCHW


def dil_conv_reference(x, w_dw, w_pw, gamma, beta,
                       *, stride, padding, dilation, eps=1e-5):
    """Pure-JAX reference matching the PyTorch module semantics (NCHW)."""
    Cin = x.shape[1]
    y = jnp.maximum(x, 0.0)
    y = jax.lax.conv_general_dilated(
        y, w_dw, window_strides=(stride, stride),
        padding=((padding, padding), (padding, padding)),
        rhs_dilation=(dilation, dilation), feature_group_count=Cin,
        dimension_numbers=("NCHW", "OIHW", "NCHW"))
    y = jax.lax.conv_general_dilated(
        y, w_pw, window_strides=(1, 1), padding="VALID",
        dimension_numbers=("NCHW", "OIHW", "NCHW"))
    mean = jnp.mean(y, axis=(1, 2, 3), keepdims=True)
    var = jnp.mean((y - mean) ** 2, axis=(1, 2, 3), keepdims=True)
    y = (y - mean) * jax.lax.rsqrt(var + eps)
    return y * gamma.reshape(1, -1, 1, 1) + beta.reshape(1, -1, 1, 1)


if __name__ == "__main__":
    # Shapes consistent with the classic DilConv config:
    # N=2, Cin=4, Cout=8, H=W=16, kernel=3, stride=1, padding=2, dilation=2.
    N, Cin, Cout, H, W = 2, 4, 8, 16, 16
    K, stride, padding, dilation = 3, 1, 2, 2

    key = jax.random.PRNGKey(0)
    kx, kdw, kpw, kg, kb = jax.random.split(key, 5)
    x = jax.random.normal(kx, (N, Cin, H, W), jnp.float32)
    w_dw = jax.random.normal(kdw, (Cin, 1, K, K), jnp.float32) * 0.3
    w_pw = jax.random.normal(kpw, (Cout, Cin, 1, 1), jnp.float32) * 0.3
    gamma = jax.random.normal(kg, (Cout,), jnp.float32) * 0.1 + 1.0
    beta = jax.random.normal(kb, (Cout,), jnp.float32) * 0.1

    ref = dil_conv_reference(x, w_dw, w_pw, gamma, beta,
                             stride=stride, padding=padding, dilation=dilation)

    # Exact path (f32 MXU operands): must match the reference tightly.
    out_f32 = dil_conv_forward(x, w_dw, w_pw, gamma, beta,
                               stride=stride, padding=padding,
                               dilation=dilation, matmul_dtype=jnp.float32)
    out_f32 = jax.block_until_ready(out_f32)
    assert out_f32.shape == ref.shape
    assert jnp.allclose(out_f32, ref, atol=1e-4, rtol=1e-4)

    # Default perf path (bf16 MXU operands, f32 accumulation): loose sanity check.
    out_bf16 = dil_conv_forward(x, w_dw, w_pw, gamma, beta,
                                stride=stride, padding=padding,
                                dilation=dilation)
    out_bf16 = jax.block_until_ready(out_bf16)
    assert out_bf16.shape == ref.shape
    assert jnp.allclose(out_bf16, ref, atol=1e-1, rtol=1e-1)

    print("KERNEL_OK")
</pallas_src>

<mosaic_0001>
module attributes {stable_mosaic.version = 11 : i64} {
  func.func @dilconv_kernel(%arg0: i32, %arg1: memref<1x20x80xf32, #tpu.memory_space<vmem>>, %arg2: memref<3x80x128xf32, #tpu.memory_space<vmem>>, %arg3: memref<1x128xf32, #tpu.memory_space<vmem>>, %arg4: memref<1x128xf32, #tpu.memory_space<vmem>>, %arg5: memref<1x16x128xf32, #tpu.memory_space<vmem>>) attributes {dimension_semantics = [#tpu.dimension_semantics<parallel>], iteration_bounds = array<i64: 2>, scalar_prefetch = 0 : i64, scratch_operands = 0 : i64, tpu.core_type = #tpu.core_type<tc>, window_params = [{transform_indices = @transform_0, window_bounds = array<i64: 1, 20, 80>}, {pipeline_mode = #tpu.pipeline_mode<synchronous>, transform_indices = @transform_1, window_bounds = array<i64: 3, 80, 128>}, {pipeline_mode = #tpu.pipeline_mode<synchronous>, transform_indices = @transform_2, window_bounds = array<i64: 1, 128>}, {pipeline_mode = #tpu.pipeline_mode<synchronous>, transform_indices = @transform_3, window_bounds = array<i64: 1, 128>}, {transform_indices = @transform_4, window_bounds = array<i64: 1, 16, 128>}]} {
    %c0 = arith.constant 0 : index
    %c0_0 = arith.constant 0 : index
    %c0_1 = arith.constant 0 : index
    %0 = vector.load %arg1[%c0, %c0_0, %c0_1] : memref<1x20x80xf32, #tpu.memory_space<vmem>>, vector<1x20x80xf32>
    %cst = arith.constant 0.000000e+00 : f32
    %1 = vector.broadcast %cst : f32 to vector<1x20x80xf32>
    %2 = arith.maximumf %0, %1 : vector<1x20x80xf32>
    %cst_2 = arith.constant 0.000000e+00 : f32
    %3 = vector.broadcast %cst_2 : f32 to vector<16x128xf32>
    %4 = vector.extract_strided_slice %2 {offsets = [0, 0, 0], sizes = [1, 16, 80], strides = [1, 1, 1]} : vector<1x20x80xf32> to vector<1x16x80xf32>
    %5 = vector.shape_cast %4 : vector<1x16x80xf32> to vector<16x80xf32>
    %c0_3 = arith.constant 0 : index
    %c0_4 = arith.constant 0 : index
    %c0_5 = arith.constant 0 : index
    %6 = vector.load %arg2[%c0_3, %c0_4, %c0_5] : memref<3x80x128xf32, #tpu.memory_space<vmem>>, vector<1x80x128xf32>
    %7 = vector.shape_cast %6 : vector<1x80x128xf32> to vector<80x128xf32>
    %cst_6 = arith.constant dense<0.000000e+00> : vector<16x128xf32>
    %8 = tpu.matmul %5, %7, %cst_6 {dimension_numbers = #tpu.dot_dimension_numbers<[1], [0], [0], [1], [0, 0, 1, 1], [], []>} : vector<16x80xf32>, vector<80x128xf32>, vector<16x128xf32> -> vector<16x128xf32>
    %9 = arith.addf %3, %8 : vector<16x128xf32>
    %10 = vector.extract_strided_slice %2 {offsets = [0, 2, 0], sizes = [1, 16, 80], strides = [1, 1, 1]} : vector<1x20x80xf32> to vector<1x16x80xf32>
    %11 = vector.shape_cast %10 : vector<1x16x80xf32> to vector<16x80xf32>
    %c1 = arith.constant 1 : index
    %c0_7 = arith.constant 0 : index
    %c0_8 = arith.constant 0 : index
    %12 = vector.load %arg2[%c1, %c0_7, %c0_8] : memref<3x80x128xf32, #tpu.memory_space<vmem>>, vector<1x80x128xf32>
    %13 = vector.shape_cast %12 : vector<1x80x128xf32> to vector<80x128xf32>
    %cst_9 = arith.constant dense<0.000000e+00> : vector<16x128xf32>
    %14 = tpu.matmul %11, %13, %cst_9 {dimension_numbers = #tpu.dot_dimension_numbers<[1], [0], [0], [1], [0, 0, 1, 1], [], []>} : vector<16x80xf32>, vector<80x128xf32>, vector<16x128xf32> -> vector<16x128xf32>
    %15 = arith.addf %9, %14 : vector<16x128xf32>
    %16 = vector.extract_strided_slice %2 {offsets = [0, 4, 0], sizes = [1, 16, 80], strides = [1, 1, 1]} : vector<1x20x80xf32> to vector<1x16x80xf32>
    %17 = vector.shape_cast %16 : vector<1x16x80xf32> to vector<16x80xf32>
    %c2 = arith.constant 2 : index
    %c0_10 = arith.constant 0 : index
    %c0_11 = arith.constant 0 : index
    %18 = vector.load %arg2[%c2, %c0_10, %c0_11] : memref<3x80x128xf32, #tpu.memory_space<vmem>>, vector<1x80x128xf32>
    %19 = vector.shape_cast %18 : vector<1x80x128xf32> to vector<80x128xf32>
    %cst_12 = arith.constant dense<0.000000e+00> : vector<16x128xf32>
    %20 = tpu.matmul %17, %19, %cst_12 {dimension_numbers = #tpu.dot_dimension_numbers<[1], [0], [0], [1], [0, 0, 1, 1], [], []>} : vector<16x80xf32>, vector<80x128xf32>, vector<16x128xf32> -> vector<16x128xf32>
    %21 = arith.addf %15, %20 : vector<16x128xf32>
    %22 = vector.shape_cast %21 : vector<16x128xf32> to vector<1x16x128xf32>
    %cst_13 = arith.constant dense<0.000000e+00> : vector<1xf32>
    %23 = vector.multi_reduction <add>, %22, %cst_13 [1, 2] : vector<1x16x128xf32> to vector<1xf32>
    %24 = vector.shape_cast %23 : vector<1xf32> to vector<1x1x1xf32>
    %25 = arith.mulf %22, %22 : vector<1x16x128xf32>
    %cst_14 = arith.constant dense<0.000000e+00> : vector<1xf32>
    %26 = vector.multi_reduction <add>, %25, %cst_14 [1, 2] : vector<1x16x128xf32> to vector<1xf32>
    %27 = vector.shape_cast %26 : vector<1xf32> to vector<1x1x1xf32>
    %cst_15 = arith.constant 2.048000e+03 : f32
    %28 = vector.broadcast %cst_15 : f32 to vector<1x1x1xf32>
    %29 = arith.divf %24, %28 : vector<1x1x1xf32>
    %cst_16 = arith.constant 2.048000e+03 : f32
    %30 = vector.broadcast %cst_16 : f32 to vector<1x1x1xf32>
    %31 = arith.divf %27, %30 : vector<1x1x1xf32>
    %32 = arith.mulf %29, %29 : vector<1x1x1xf32>
    %33 = arith.subf %31, %32 : vector<1x1x1xf32>
    %34 = vector.broadcast %29 : vector<1x1x1xf32> to vector<1x16x128xf32>
    %35 = arith.subf %22, %34 : vector<1x16x128xf32>
    %cst_17 = arith.constant 9.99999974E-6 : f32
    %36 = vector.broadcast %cst_17 : f32 to vector<1x1x1xf32>
    %37 = arith.addf %33, %36 : vector<1x1x1xf32>
    %38 = math.rsqrt %37 : vector<1x1x1xf32>
    %39 = vector.broadcast %38 : vector<1x1x1xf32> to vector<1x16x128xf32>
    %40 = arith.mulf %35, %39 : vector<1x16x128xf32>
    %c0_18 = arith.constant 0 : index
    %c0_19 = arith.constant 0 : index
    %41 = vector.load %arg3[%c0_18, %c0_19] : memref<1x128xf32, #tpu.memory_space<vmem>>, vector<1x128xf32>
    %42 = vector.shape_cast %41 : vector<1x128xf32> to vector<1x1x128xf32>
    %43 = vector.broadcast %42 : vector<1x1x128xf32> to vector<1x16x128xf32>
    %44 = arith.mulf %40, %43 : vector<1x16x128xf32>
    %c0_20 = arith.constant 0 : index
    %c0_21 = arith.constant 0 : index
    %45 = vector.load %arg4[%c0_20, %c0_21] : memref<1x128xf32, #tpu.memory_space<vmem>>, vector<1x128xf32>
    %46 = vector.shape_cast %45 : vector<1x128xf32> to vector<1x1x128xf32>
    %47 = vector.broadcast %46 : vector<1x1x128xf32> to vector<1x16x128xf32>
    %48 = arith.addf %44, %47 : vector<1x16x128xf32>
    %c0_22 = arith.constant 0 : index
    %c0_23 = arith.constant 0 : index
    %c0_24 = arith.constant 0 : index
    %49 = vector.load %arg5[%c0_22, %c0_23, %c0_24] : memref<1x16x128xf32, #tpu.memory_space<vmem>>, vector<1x16x128xf32>
    tpu.vector_store %arg5[%c0_22, %c0_23, %c0_24], %48 {strides = array<i32>} : memref<1x16x128xf32, #tpu.memory_space<vmem>>, vector<1x16x128xf32>,
    return
  }
  func.func @transform_0(%arg0: i32) -> (i32, i32, i32) {
    %c0_i32 = arith.constant 0 : i32
    %c0_i32_0 = arith.constant 0 : i32
    %c0_i32_1 = arith.constant 0 : i32
    return %arg0, %c0_i32, %c0_i32_0 : i32, i32, i32
  }
  func.func @transform_1(%arg0: i32) -> (i32, i32, i32) {
    %c0_i32 = arith.constant 0 : i32
    %c0_i32_0 = arith.constant 0 : i32
    %c0_i32_1 = arith.constant 0 : i32
    %c0_i32_2 = arith.constant 0 : i32
    return %c0_i32, %c0_i32_0, %c0_i32_1 : i32, i32, i32
  }
  func.func @transform_2(%arg0: i32) -> (i32, i32) {
    %c0_i32 = arith.constant 0 : i32
    %c0_i32_0 = arith.constant 0 : i32
    %c0_i32_1 = arith.constant 0 : i32
    return %c0_i32, %c0_i32_0 : i32, i32
  }
  func.func @transform_3(%arg0: i32) -> (i32, i32) {
    %c0_i32 = arith.constant 0 : i32
    %c0_i32_0 = arith.constant 0 : i32
    %c0_i32_1 = arith.constant 0 : i32
    return %c0_i32, %c0_i32_0 : i32, i32
  }
  func.func @transform_4(%arg0: i32) -> (i32, i32, i32) {
    %c0_i32 = arith.constant 0 : i32
    %c0_i32_0 = arith.constant 0 : i32
    %c0_i32_1 = arith.constant 0 : i32
    return %arg0, %c0_i32, %c0_i32_0 : i32, i32, i32
  }
}

</mosaic_0001>

<llo_original>
// kernel: dil_conv_forward.1
$region0: #{dil_conv_forward.1}
  #allocation0 [shape = 'u32[]', space=smem, size = 0x4, offset = 0x4, fixed_abs, tag = 'smem constant byte address 0x4 - core index']
  #allocation1 [shape = 'u32[144,128]{1,0:T(1,128)}', space=vmem, size = 0x12000, scoped, tag = 'internal scratch']
  %s0 = inlined_call_operand.vmem [shape: f32[2,20,80], index: 0, kind: input, shape index: {}]
  %s1 = inlined_call_operand.vmem [shape: f32[3,80,128], index: 1, kind: input, shape index: {}]
  %s2 = inlined_call_operand.vmem [shape: f32[1,128], index: 2, kind: input, shape index: {}]
  %s3 = inlined_call_operand.vmem [shape: f32[1,128], index: 3, kind: input, shape index: {}]
  %s4 = inlined_call_operand.vmem [shape: f32[2,16,128], index: 4, kind: output, shape index: {}]
  %s5 = sld [smem:[#allocation0]]
  $region49: #{dil_conv_forward.1} parent=0
    _
  %s7 = ssub.s32 1, %s5
  %s8 = scalar_select 0, %s7, %s5
  loop: start=0, step=1, limit=4
  $region2: #{dil_conv_forward.1} parent=0 // loop_pre_header
    _
  $region3: #{dil_conv_forward.1} parent=0 // loop_header
    %s10 = sphi 0, %s14
    %p11 = scmp.ge.s32.totalorder %s10, 4
    %s20 = sphi 0, %s22
    %s23 = sphi 0, %s20
    %s24 = sphi 0, %s23
    %s40 = sphi 0, %s24
    %s44 = sphi 0, %s44
    %s46 = sphi 0, %s44
    %s47 = sphi 0, %s46
    %s61 = sphi 0, %s47
    %s65 = sphi 0, %s65
    %s67 = sphi 0, %s65
    %s68 = sphi 0, %s67
    %s82 = sphi 0, %s68
    %s86 = sphi 0, %s86
    %s88 = sphi 0, %s86
    %s89 = sphi 0, %s88
    %s103 = sphi 0, %s89
    %s109 = sphi 0, %s111
    %s112 = sphi 0, %s109
    %s113 = sphi 0, %s112
    %s129 = sphi 0, %s113
  $region4: #{dil_conv_forward.1} parent=0 // loop_header_branch
    %13 = sbr.rel (%p11) target = $region8
  $region5: #{dil_conv_forward.1} parent=0 // loop_body
    %s15 = ssub.s32 %s10, 1
    %s16 = ssub.s32 %s10, 2
    %s17 = sadd.s32 %s10, 1
    %s18 = ssub.s32 %s10, %s17
    %p19 = scmp.eq.s32.totalorder %s18, 0
    %s21 = sadd.s32 %s20, 1
    %s22 = scalar_select %p19, %s20, %s21
    %p25 = pneg %p19
    %p26 = scmp.eq.s32.totalorder %s10, 1
    %p27 = por %p25, %p26
    %p28 = scmp.ne.s32.totalorder %s20, %s23
    %p29 = scmp.eq.s32.totalorder %s10, 0
    %p30 = por %p28, %p29
    %p31 = scmp.ne.s32.totalorder %s20, %s23
    %p32 = scmp.eq.s32.totalorder %s15, 1
    %p33 = por %p31, %p32
    %p34 = scmp.ne.s32.totalorder %s23, %s24
    %p35 = scmp.eq.s32.totalorder %s15, 0
    %p36 = por %p34, %p35
    %p37 = scmp.ne.s32.totalorder %s23, %s24
    %p38 = scmp.eq.s32.totalorder %s16, 1
    %p39 = por %p37, %p38
    %p41 = scmp.ne.s32.totalorder %s24, %s40
    %p42 = scmp.eq.s32.totalorder %s16, 0
    %p43 = por %p41, %p42
    %s45 = sadd.s32 %s44, 1
    %p48 = scmp.eq.s32.totalorder %s10, 1
    %p49 = scmp.ne.s32.totalorder %s44, %s46
    %p50 = scmp.eq.s32.totalorder %s10, 0
    %p51 = por %p49, %p50
    %p52 = scmp.ne.s32.totalorder %s44, %s46
    %p53 = scmp.eq.s32.totalorder %s15, 1
    %p54 = por %p52, %p53
    %p55 = scmp.ne.s32.totalorder %s46, %s47
    %p56 = scmp.eq.s32.totalorder %s15, 0
    %p57 = por %p55, %p56
    %p58 = scmp.ne.s32.totalorder %s46, %s47
    %p59 = scmp.eq.s32.totalorder %s16, 1
    %p60 = por %p58, %p59
    %p62 = scmp.ne.s32.totalorder %s47, %s61
    %p63 = scmp.eq.s32.totalorder %s16, 0
    %p64 = por %p62, %p63
    %s66 = sadd.s32 %s65, 1
    %p69 = scmp.eq.s32.totalorder %s10, 1
    %p70 = scmp.ne.s32.totalorder %s65, %s67
    %p71 = scmp.eq.s32.totalorder %s10, 0
    %p72 = por %p70, %p71
    %p73 = scmp.ne.s32.totalorder %s65, %s67
    %p74 = scmp.eq.s32.totalorder %s15, 1
    %p75 = por %p73, %p74
    %p76 = scmp.ne.s32.totalorder %s67, %s68
    %p77 = scmp.eq.s32.totalorder %s15, 0
    %p78 = por %p76, %p77
    %p79 = scmp.ne.s32.totalorder %s67, %s68
    %p80 = scmp.eq.s32.totalorder %s16, 1
    %p81 = por %p79, %p80
    %p83 = scmp.ne.s32.totalorder %s68, %s82
    %p84 = scmp.eq.s32.totalorder %s16, 0
    %p85 = por %p83, %p84
    %s87 = sadd.s32 %s86, 1
    %p90 = scmp.eq.s32.totalorder %s10, 1
    %p91 = scmp.ne.s32.totalorder %s86, %s88
    %p92 = scmp.eq.s32.totalorder %s10, 0
    %p93 = por %p91, %p92
    %p94 = scmp.ne.s32.totalorder %s86, %s88
    %p95 = scmp.eq.s32.totalorder %s15, 1
    %p96 = por %p94, %p95
    %p97 = scmp.ne.s32.totalorder %s88, %s89
    %p98 = scmp.eq.s32.totalorder %s15, 0
    %p99 = por %p97, %p98
    %p100 = scmp.ne.s32.totalorder %s88, %s89
    %p101 = scmp.eq.s32.totalorder %s16, 1
    %p102 = por %p100, %p101
    %p104 = scmp.ne.s32.totalorder %s89, %s103
    %p105 = scmp.eq.s32.totalorder %s16, 0
    %p106 = por %p104, %p105
    %s107 = ssub.s32 %s10, %s17
    %p108 = scmp.eq.s32.totalorder %s107, 0
    %s110 = sadd.s32 %s109, 1
    %s111 = scalar_select %p108, %s109, %s110
    %p114 = pneg %p108
    %p115 = scmp.eq.s32.totalorder %s10, 1
    %p116 = por %p114, %p115
    %p117 = scmp.ne.s32.totalorder %s109, %s112
    %p118 = scmp.eq.s32.totalorder %s10, 0
    %p119 = por %p117, %p118
    %p120 = scmp.ne.s32.totalorder %s109, %s112
    %p121 = scmp.eq.s32.totalorder %s15, 1
    %p122 = por %p120, %p121
    %p123 = scmp.ne.s32.totalorder %s112, %s113
    %p124 = scmp.eq.s32.totalorder %s15, 0
    %p125 = por %p123, %p124
    %p126 = scmp.ne.s32.totalorder %s112, %s113
    %p127 = scmp.eq.s32.totalorder %s16, 1
    %p128 = por %p126, %p127
    %p130 = scmp.ne.s32.totalorder %s113, %s129
    %p131 = scmp.eq.s32.totalorder %s16, 0
    %p132 = por %p130, %p131
    %p133 = scmp.le.s32.totalorder 1, %s10
    %p134 = scmp.lt.s32.totalorder %s10, 3
    %p135 = pnand %p133, %p134
    %p136 = pneg %p135
    // Predicated region
    $region9: #{dil_conv_forward.1} parent=5 // pred_check
      _
    $region10: #{dil_conv_forward.1} parent=5 // pred_check_branch
      %138 = sbr.rel (%p135) target = $region12
    $region11: #{dil_conv_forward.1} parent=5 // pred_region
      %s139 = ssub.s32 %s10, 1
      // Predicated region
      $region13: #{dil_conv_forward.1} parent=11 // pred_check
        %p140 = pneg %p57
      $region14: #{dil_conv_forward.1} parent=11 // pred_check_branch
        %142 = sbr.rel (%p140) target = $region16
      $region15: #{dil_conv_forward.1} parent=11 // pred_region
        _
      $region16: #{dil_conv_forward.1} parent=11 // pred_fallthru
        _
      // Predicated region
      $region17: #{dil_conv_forward.1} parent=11 // pred_check
        %p143 = pneg %p78
      $region18: #{dil_conv_forward.1} parent=11 // pred_check_branch
        %145 = sbr.rel (%p143) target = $region20
      $region19: #{dil_conv_forward.1} parent=11 // pred_region
        _
      $region20: #{dil_conv_forward.1} parent=11 // pred_fallthru
        _
      // Predicated region
      $region21: #{dil_conv_forward.1} parent=11 // pred_check
        %p146 = pneg %p99
      $region22: #{dil_conv_forward.1} parent=11 // pred_check_branch
        %148 = sbr.rel (%p146) target = $region24
      $region23: #{dil_conv_forward.1} parent=11 // pred_region
        _
      $region24: #{dil_conv_forward.1} parent=11 // pred_fallthru
        _
    $region12: #{dil_conv_forward.1} parent=5 // pred_fallthru
      _
    %p149 = scmp.lt.s32.totalorder %s10, 2
    // Predicated region
    $region25: #{dil_conv_forward.1} parent=5 // pred_check
      %p150 = pneg %p149
    $region26: #{dil_conv_forward.1} parent=5 // pred_check_branch
      %152 = sbr.rel (%p150) target = $region28
    $region27: #{dil_conv_forward.1} parent=5 // pred_region
      // Predicated region
      $region29: #{dil_conv_forward.1} parent=27 // pred_check
        %p153 = pneg %p30
      $region30: #{dil_conv_forward.1} parent=27 // pred_check_branch
        %155 = sbr.rel (%p153) target = $region32
      $region31: #{dil_conv_forward.1} parent=27 // pred_region
        %p156 = scmp.lt.s32.totalorder %s10, 1
        %s157 = scalar_select %p156, %s10, 1
        %s158 = smul.addr %s157, 3
        %s159 = smul.addr %s158, 8
        %s160 = scalar_lea.vmem %s0, %s159
      $region32: #{dil_conv_forward.1} parent=27 // pred_fallthru
        _
    $region28: #{dil_conv_forward.1} parent=5 // pred_fallthru
      _
    %p161 = scmp.le.s32.totalorder 1, %s10
    %p162 = scmp.lt.s32.totalorder %s10, 3
    %p163 = pnand %p161, %p162
    %p164 = pneg %p163
    // Predicated region
    $region33: #{dil_conv_forward.1} parent=5 // pred_check
      _
    $region34: #{dil_conv_forward.1} parent=5 // pred_check_branch
      %166 = sbr.rel (%p163) target = $region36
    $region35: #{dil_conv_forward.1} parent=5 // pred_region
      %s167 = ssub.s32 %s10, 1
      %p168 = scmp.lt.s32.totalorder %s15, 1
      %s169 = scalar_select %p168, %s15, 1
      %s170 = smul.addr %s169, 3
      %s171 = smul.addr %s170, 8
      %s172 = scalar_lea.vmem %s0, %s171
      %p173 = pneg %p36
      %p174 = pneg %p33
      %p175 = pneg %p57
      %p176 = pneg %p54
      %p177 = pneg %p78
      %p178 = pneg %p75
      %p179 = pneg %p99
      %p180 = pneg %p96
      %p181 = pneg %p125
      %p182 = pneg %p122
      %p183 = scmp.lt.s32.totalorder %s15, 1
      %s184 = scalar_select %p183, %s15, 1
      %s185 = smul.addr %s184, 2
      %s186 = smul.addr %s185, 8
      %s187 = scalar_lea.vmem %s4, %s186
      %p188 = scmp.lt.s32.totalorder %s15, 1
      %s189 = scalar_select %p188, %s15, 1
      %s190 = smul.addr %s189, 3
      %s191 = smul.addr %s190, 8
      %s192 = scalar_lea.vmem %s0, %s191
      %p193 = scmp.lt.s32.totalorder %s15, 1
      %s194 = scalar_select %p193, %s15, 1
      %s195 = smul.addr %s194, 2
      %s196 = smul.addr %s195, 8
      %s197 = scalar_lea.vmem %s4, %s196
      %v198 = vld [vmem:[%s192] sm:$0xff]
      %v199 = vld [vmem:[%s192 + $0x8] sm:$0xff]
      %v200 = vld [vmem:[%s192 + $0x10] sm:$0xf]
      %v201 = vmax.f32 %v198, 0.0
      %v202 = vmax.f32 %v199, 0.0
      %v203 = vmax.f32 %v200, 0.0
      %v204 = vld [vmem:[%s1] sm:$0xff]
      %v205 = vld [vmem:[%s1 + $0x8] sm:$0xff]
      %v206 = vld [vmem:[%s1 + $0x10] sm:$0xff]
      %v207 = vld [vmem:[%s1 + $0x18] sm:$0xff]
      %v208 = vld [vmem:[%s1 + $0x20] sm:$0xff]
      %v209 = vld [vmem:[%s1 + $0x28] sm:$0xff]
      %v210 = vld [vmem:[%s1 + $0x30] sm:$0xff]
      %v211 = vld [vmem:[%s1 + $0x38] sm:$0xff]
      %v212 = vld [vmem:[%s1 + $0x40] sm:$0xff]
      %v213 = vld [vmem:[%s1 + $0x48] sm:$0xff]
      %s214 = scalar_lea.vmem %s1, 80
      %v215 = vld [vmem:[%s214] sm:$0xff]
      %v216 = vld [vmem:[%s214 + $0x8] sm:$0xff]
      %v217 = vld [vmem:[%s214 + $0x10] sm:$0xff]
      %v218 = vld [vmem:[%s214 + $0x18] sm:$0xff]
      %v219 = vld [vmem:[%s214 + $0x20] sm:$0xff]
      %v220 = vld [vmem:[%s214 + $0x28] sm:$0xff]
      %v221 = vld [vmem:[%s214 + $0x30] sm:$0xff]
      %v222 = vld [vmem:[%s214 + $0x38] sm:$0xff]
      %v223 = vld [vmem:[%s214 + $0x40] sm:$0xff]
      %v224 = vld [vmem:[%s214 + $0x48] sm:$0xff]
      %vm228 = vcmask 1045504
      %v229 = vrot.slane %v201, 2
      %v230 = vrot.slane %v202, 2
      %v231 = vsel %vm228, %v229, %v230
      %v232 = vrot.slane %v203, 2
      %v233 = vsel %vm228, %v230, %v232
      %vm234 = vcmask 654336
      %v235 = vsel %vm234, %v231, 0
      %v237 = vsel %vm234, %v233, 0
      %239 = vmatprep.subr.mxu0 0.0
      %240 = vmatpush1.msra.mxu0 0.0
      %241 = vmatprep.subr.mxu0 0.0
      %242 = vmatpush1.msra.mxu0 0.0
      %243 = vmatprep.subr.mxu0 0.0
      %244 = vmatpush1.msra.mxu0 0.0
      %245 = vmatprep.subr.mxu0 0.0
      %246 = vmatpush1.msra.mxu0 0.0
      %247 = vmatprep.subr.mxu0 0.0
      %248 = vmatpush1.msra.mxu0 0.0
      %249 = vmatprep.subr.mxu0 0.0
      %250 = vmatpush1.msra.mxu0 0.0
      %251 = vmatprep.subr.mxu0 0.0
      %252 = vmatpush1.msra.mxu0 %v224
      %253 = vmatprep.subr.mxu0 0.0
      %254 = vmatpush1.msra.mxu0 %v223
      %255 = vmatprep.subr.mxu0 0.0
      %256 = vmatpush1.msra.mxu0 %v222
      %257 = vmatprep.subr.mxu0 0.0
      %258 = vmatpush1.msra.mxu0 %v221
      %259 = vmatprep.subr.mxu0 0.0
      %260 = vmatpush1.msra.mxu0 %v220
      %261 = vmatprep.subr.mxu0 0.0
      %262 = vmatpush1.msra.mxu0 %v219
      %263 = vmatprep.subr.mxu0 0.0
      %264 = vmatpush1.msra.mxu0 %v218
      %265 = vmatprep.subr.mxu0 0.0
      %266 = vmatpush1.msra.mxu0 %v217
      %267 = vmatprep.subr.mxu0 0.0
      %268 = vmatpush1.msra.mxu0 %v216
      %269 = vmatprep.subr.mxu0 0.0
      %270 = vmatpush1.msra.mxu0 %v215
      %271 = vmatprep.subr.mxu0 0.0
      %272 = vmatpush2.msra.mxu0 0.0
      %273 = vmatprep.subr.mxu0 0.0
      %274 = vmatpush2.msra.mxu0 0.0
      %275 = vmatprep.subr.mxu0 0.0
      %276 = vmatpush2.msra.mxu0 0.0
      %277 = vmatprep.subr.mxu0 0.0
      %278 = vmatpush2.msra.mxu0 0.0
      %279 = vmatprep.subr.mxu0 0.0
      %280 = vmatpush2.msra.mxu0 0.0
      %281 = vmatprep.subr.mxu0 0.0
      %282 = vmatpush2.msra.mxu0 0.0
      %283 = vmatprep.subr.mxu0 0.0
      %284 = vmatpush2.msra.mxu0 0.0
      %285 = vmatprep.subr.mxu0 0.0
      %286 = vmatpush2.msra.mxu0 0.0
      %287 = vmatprep.subr.mxu0 0.0
      %288 = vmatpush2.msra.mxu0 0.0
      %289 = vmatprep.subr.mxu0 0.0
      %290 = vmatpush2.msra.mxu0 0.0
      %291 = vmatprep.subr.mxu0 0.0
      %292 = vmatpush2.msra.mxu0 0.0
      %293 = vmatprep.subr.mxu0 0.0
      %294 = vmatpush2.msra.mxu0 0.0
      %295 = vmatprep.subr.mxu0 0.0
      %296 = vmatpush2.msra.mxu0 0.0
      %297 = vmatprep.subr.mxu0 0.0
      %298 = vmatpush2.msra.mxu0 0.0
      %299 = vmatprep.subr.mxu0 0.0
      %300 = vmatpush2.msra.mxu0 0.0
      %301 = vmatprep.subr.mxu0 0.0
      %302 = vmatpush2.msra.mxu0 0.0
      %303 = vmatprep.mubr.f32.mxu0 0.0
      %304 = vmatmul.mubr.f32.gmra.mxu0 %v235
      %v305 = vpop.f32.mrf.mxu0
      %v306 = vadd.f32 0.0, %v305
      %v307 = vpop.f32.mrf.mxu0
      %308 = vmatprep.mubr.f32.mxu0 0.0
      %309 = vmatmul.mubr.f32.gmra.mxu0 %v237
      %v310 = vpop.f32.mrf.mxu0
      %v311 = vadd.f32 0.0, %v310
      %v312 = vpop.f32.mrf.mxu0
      %313 = vdwg.mxu0
      %v314 = vsel %vm234, %v201, 0
      %v316 = vsel %vm234, %v202, 0
      %318 = vmatprep.subr.mxu0 0.0
      %319 = vmatpush1.msra.mxu0 0.0
      %320 = vmatprep.subr.mxu0 0.0
      %321 = vmatpush1.msra.mxu0 0.0
      %322 = vmatprep.subr.mxu0 0.0
      %323 = vmatpush1.msra.mxu0 0.0
      %324 = vmatprep.subr.mxu0 0.0
      %325 = vmatpush1.msra.mxu0 0.0
      %326 = vmatprep.subr.mxu0 0.0
      %327 = vmatpush1.msra.mxu0 0.0
      %328 = vmatprep.subr.mxu0 0.0
      %329 = vmatpush1.msra.mxu0 0.0
      %330 = vmatprep.subr.mxu0 0.0
      %331 = vmatpush1.msra.mxu0 %v213
      %332 = vmatprep.subr.mxu0 0.0
      %333 = vmatpush1.msra.mxu0 %v212
      %334 = vmatprep.subr.mxu0 0.0
      %335 = vmatpush1.msra.mxu0 %v211
      %336 = vmatprep.subr.mxu0 0.0
      %337 = vmatpush1.msra.mxu0 %v210
      %338 = vmatprep.subr.mxu0 0.0
      %339 = vmatpush1.msra.mxu0 %v209
      %340 = vmatprep.subr.mxu0 0.0
      %341 = vmatpush1.msra.mxu0 %v208
      %342 = vmatprep.subr.mxu0 0.0
      %343 = vmatpush1.msra.mxu0 %v207
      %344 = vmatprep.subr.mxu0 0.0
      %345 = vmatpush1.msra.mxu0 %v206
      %346 = vmatprep.subr.mxu0 0.0
      %347 = vmatpush1.msra.mxu0 %v205
      %348 = vmatprep.subr.mxu0 0.0
      %349 = vmatpush1.msra.mxu0 %v204
      %350 = vmatprep.subr.mxu0 0.0
      %351 = vmatpush2.msra.mxu0 0.0
      %352 = vmatprep.subr.mxu0 0.0
      %353 = vmatpush2.msra.mxu0 0.0
      %354 = vmatprep.subr.mxu0 0.0
      %355 = vmatpush2.msra.mxu0 0.0
      %356 = vmatprep.subr.mxu0 0.0
      %357 = vmatpush2.msra.mxu0 0.0
      %358 = vmatprep.subr.mxu0 0.0
      %359 = vmatpush2.msra.mxu0 0.0
      %360 = vmatprep.subr.mxu0 0.0
      %361 = vmatpush2.msra.mxu0 0.0
      %362 = vmatprep.subr.mxu0 0.0
      %363 = vmatpush2.msra.mxu0 0.0
      %364 = vmatprep.subr.mxu0 0.0
      %365 = vmatpush2.msra.mxu0 0.0
      %366 = vmatprep.subr.mxu0 0.0
      %367 = vmatpush2.msra.mxu0 0.0
      %368 = vmatprep.subr.mxu0 0.0
      %369 = vmatpush2.msra.mxu0 0.0
      %370 = vmatprep.subr.mxu0 0.0
      %371 = vmatpush2.msra.mxu0 0.0
      %372 = vmatprep.subr.mxu0 0.0
      %373 = vmatpush2.msra.mxu0 0.0
      %374 = vmatprep.subr.mxu0 0.0
      %375 = vmatpush2.msra.mxu0 0.0
      %376 = vmatprep.subr.mxu0 0.0
      %377 = vmatpush2.msra.mxu0 0.0
      %378 = vmatprep.subr.mxu0 0.0
      %379 = vmatpush2.msra.mxu0 0.0
      %380 = vmatprep.subr.mxu0 0.0
      %381 = vmatpush2.msra.mxu0 0.0
      %382 = vmatprep.mubr.f32.mxu0 0.0
      %383 = vmatmul.mubr.f32.gmra.mxu0 %v314
      %v384 = vpop.f32.mrf.mxu0
      %v385 = vadd.f32 %v306, %v384
      %v386 = vpop.f32.mrf.mxu0
      %387 = vmatprep.mubr.f32.mxu0 0.0
      %388 = vmatmul.mubr.f32.gmra.mxu0 %v316
      %v389 = vpop.f32.mrf.mxu0
      %v390 = vadd.f32 %v311, %v389
      %v391 = vpop.f32.mrf.mxu0
      %392 = vdwg.mxu0
      %s393 = scalar_lea.vmem %s1, 160
      %v394 = vld [vmem:[%s393] sm:$0xff]
      %v395 = vld [vmem:[%s393 + $0x8] sm:$0xff]
      %v396 = vld [vmem:[%s393 + $0x10] sm:$0xff]
      %v397 = vld [vmem:[%s393 + $0x18] sm:$0xff]
      %v398 = vld [vmem:[%s393 + $0x20] sm:$0xff]
      %v399 = vld [vmem:[%s393 + $0x28] sm:$0xff]
      %v400 = vld [vmem:[%s393 + $0x30] sm:$0xff]
      %v401 = vld [vmem:[%s393 + $0x38] sm:$0xff]
      %v402 = vld [vmem:[%s393 + $0x40] sm:$0xff]
      %v403 = vld [vmem:[%s393 + $0x48] sm:$0xff]
      %vm404 = vcmask 1043456
      %v405 = vrot.slane %v201, 4
      %v406 = vrot.slane %v202, 4
      %v407 = vsel %vm404, %v405, %v406
      %v408 = vrot.slane %v203, 4
      %v409 = vsel %vm404, %v406, %v408
      %v410 = vsel %vm234, %v407, 0
      %v412 = vsel %vm234, %v409, 0
      %414 = vmatprep.subr.mxu0 0.0
      %415 = vmatpush1.msra.mxu0 0.0
      %416 = vmatprep.subr.mxu0 0.0
      %417 = vmatpush1.msra.mxu0 0.0
      %418 = vmatprep.subr.mxu0 0.0
      %419 = vmatpush1.msra.mxu0 0.0
      %420 = vmatprep.subr.mxu0 0.0
      %421 = vmatpush1.msra.mxu0 0.0
      %422 = vmatprep.subr.mxu0 0.0
      %423 = vmatpush1.msra.mxu0 0.0
      %424 = vmatprep.subr.mxu0 0.0
      %425 = vmatpush1.msra.mxu0 0.0
      %426 = vmatprep.subr.mxu0 0.0
      %427 = vmatpush1.msra.mxu0 %v403
      %428 = vmatprep.subr.mxu0 0.0
      %429 = vmatpush1.msra.mxu0 %v402
      %430 = vmatprep.subr.mxu0 0.0
      %431 = vmatpush1.msra.mxu0 %v401
      %432 = vmatprep.subr.mxu0 0.0
      %433 = vmatpush1.msra.mxu0 %v400
      %434 = vmatprep.subr.mxu0 0.0
      %435 = vmatpush1.msra.mxu0 %v399
      %436 = vmatprep.subr.mxu0 0.0
      %437 = vmatpush1.msra.mxu0 %v398
      %438 = vmatprep.subr.mxu0 0.0
      %439 = vmatpush1.msra.mxu0 %v397
      %440 = vmatprep.subr.mxu0 0.0
      %441 = vmatpush1.msra.mxu0 %v396
      %442 = vmatprep.subr.mxu0 0.0
      %443 = vmatpush1.msra.mxu0 %v395
      %444 = vmatprep.subr.mxu0 0.0
      %445 = vmatpush1.msra.mxu0 %v394
      %446 = vmatprep.subr.mxu0 0.0
      %447 = vmatpush2.msra.mxu0 0.0
      %448 = vmatprep.subr.mxu0 0.0
      %449 = vmatpush2.msra.mxu0 0.0
      %450 = vmatprep.subr.mxu0 0.0
      %451 = vmatpush2.msra.mxu0 0.0
      %452 = vmatprep.subr.mxu0 0.0
      %453 = vmatpush2.msra.mxu0 0.0
      %454 = vmatprep.subr.mxu0 0.0
      %455 = vmatpush2.msra.mxu0 0.0
      %456 = vmatprep.subr.mxu0 0.0
      %457 = vmatpush2.msra.mxu0 0.0
      %458 = vmatprep.subr.mxu0 0.0
      %459 = vmatpush2.msra.mxu0 0.0
      %460 = vmatprep.subr.mxu0 0.0
      %461 = vmatpush2.msra.mxu0 0.0
      %462 = vmatprep.subr.mxu0 0.0
      %463 = vmatpush2.msra.mxu0 0.0
      %464 = vmatprep.subr.mxu0 0.0
      %465 = vmatpush2.msra.mxu0 0.0
      %466 = vmatprep.subr.mxu0 0.0
      %467 = vmatpush2.msra.mxu0 0.0
      %468 = vmatprep.subr.mxu0 0.0
      %469 = vmatpush2.msra.mxu0 0.0
      %470 = vmatprep.subr.mxu0 0.0
      %471 = vmatpush2.msra.mxu0 0.0
      %472 = vmatprep.subr.mxu0 0.0
      %473 = vmatpush2.msra.mxu0 0.0
      %474 = vmatprep.subr.mxu0 0.0
      %475 = vmatpush2.msra.mxu0 0.0
      %476 = vmatprep.subr.mxu0 0.0
      %477 = vmatpush2.msra.mxu0 0.0
      %478 = vmatprep.mubr.f32.mxu0 0.0
      %479 = vmatmul.mubr.f32.gmra.mxu0 %v410
      %v480 = vpop.f32.mrf.mxu0
      %v481 = vadd.f32 0.0, %v480
      %v482 = vpop.f32.mrf.mxu0
      %483 = vmatprep.mubr.f32.mxu0 0.0
      %484 = vmatmul.mubr.f32.gmra.mxu0 %v412
      %v485 = vpop.f32.mrf.mxu0
      %v486 = vadd.f32 0.0, %v485
      %v487 = vpop.f32.mrf.mxu0
      %488 = vdwg.mxu0
      %v489 = vadd.f32 %v385, %v481
      %v490 = vadd.f32 %v390, %v486
      %v491 = vadd.f32 %v489, %v490
      %492 = vadd.xlane.f32.xlu0 %v491
      %v493 = vpop.xlane.xlu0 %492
      %v494 = vrot.slane %v493, 4
      %v495 = vadd.f32 %v493, %v494
      %v496 = vrot.slane %v495, 2
      %v497 = vadd.f32 %v495, %v496
      %v498 = vrot.slane %v497, 1
      %v499 = vadd.f32 %v497, %v498
      %v500 = vmul.f32 %v489, %v489
      %v501 = vmul.f32 %v490, %v490
      %v502 = vadd.f32 %v500, %v501
      %503 = vadd.xlane.f32.xlu0 %v502
      %v504 = vpop.xlane.xlu0 %503
      %v505 = vrot.slane %v504, 4
      %v506 = vadd.f32 %v504, %v505
      %v507 = vrot.slane %v506, 2
      %v508 = vadd.f32 %v506, %v507
      %v509 = vrot.slane %v508, 1
      %v510 = vadd.f32 %v508, %v509
      %v511 = vrcp.pop 2048.0
      %v512 = vmul.f32 %v499, %v511
      %v513 = vmul.f32 %v510, %v511
      %v514 = vmul.f32 %v512, %v512
      %v515 = vsub.f32 %v513, %v514
      %v516 = vsub.f32 %v489, %v512
      %v517 = vsub.f32 %v490, %v512
      %v518 = vadd.f32 %v515, 1e-05
      %v519 = vrsqrt.pop %v518
      %v520 = vmul.f32 %v516, %v519
      %v521 = vmul.f32 %v517, %v519
      %v522 = vld [vmem:[%s2] sm:$0x1]
      %v524 = vlaneseq
      %v525 = vshrl.u32 %v524, 7
      %v526 = vsub.s32 0, %v525
      %v527 = vrot.slane %v522, %v526
      %v529 = vmul.f32 %v520, %v527
      %v530 = vmul.f32 %v521, %v527
      %v531 = vld [vmem:[%s3] sm:$0x1]
      %v533 = vlaneseq
      %v534 = vshrl.u32 %v533, 7
      %v535 = vsub.s32 0, %v534
      %v536 = vrot.slane %v531, %v535
      %v538 = vadd.f32 %v529, %v536
      %v539 = vadd.f32 %v530, %v536
      %540 = vst [vmem:[%s197] sm:$0xff] %v538
      %541 = vst [vmem:[%s197 + $0x8] sm:$0xff] %v539
      %p542 = scmp.lt.s32.totalorder %s15, 1
      %s543 = scalar_select %p542, %s15, 1
      %s544 = smul.addr %s543, 2
      %s545 = smul.addr %s544, 8
      %s546 = scalar_lea.vmem %s4, %s545
      // Predicated region
      $region37: #{dil_conv_forward.1} parent=35 // pred_check
        %p547 = pneg %p122
      $region38: #{dil_conv_forward.1} parent=35 // pred_check_branch
        %549 = sbr.rel (%p547) target = $region40
      $region39: #{dil_conv_forward.1} parent=35 // pred_region
        _
      $region40: #{dil_conv_forward.1} parent=35 // pred_fallthru
        _
    $region36: #{dil_conv_forward.1} parent=5 // pred_fallthru
      _
    %p550 = scmp.le.s32.totalorder 2, %s10
    // Predicated region
    $region41: #{dil_conv_forward.1} parent=5 // pred_check
      %p551 = pneg %p550
    $region42: #{dil_conv_forward.1} parent=5 // pred_check_branch
      %553 = sbr.rel (%p551) target = $region44
    $region43: #{dil_conv_forward.1} parent=5 // pred_region
      %s554 = ssub.s32 %s10, 2
      // Predicated region
      $region45: #{dil_conv_forward.1} parent=43 // pred_check
        %p555 = pneg %p128
      $region46: #{dil_conv_forward.1} parent=43 // pred_check_branch
        %557 = sbr.rel (%p555) target = $region48
      $region47: #{dil_conv_forward.1} parent=43 // pred_region
        %p558 = scmp.lt.s32.totalorder %s16, 1
        %s559 = scalar_select %p558, %s16, 1
        %s560 = smul.addr %s559, 2
        %s561 = smul.addr %s560, 8
        %s562 = scalar_lea.vmem %s4, %s561
      $region48: #{dil_conv_forward.1} parent=43 // pred_fallthru
        _
    $region44: #{dil_conv_forward.1} parent=5 // pred_fallthru
      _
  $region6: #{dil_conv_forward.1} parent=0 // loop_footer
    %s14 = sadd.s32 1, %s10
  $region7: #{dil_conv_forward.1} parent=0 // loop_footer_branch
    %9 = sbr.rel target = $region3
  $region8: #{dil_conv_forward.1} parent=0 // loop_exit
    _

</llo_original>
